<compile_context>
chip_gen: v7x
topology: tpu7x:2x2x1
jax: 0.10.0
libtpu: 0.0.40
codegen_flags: <defaults>
</compile_context>

<pallas_src>
import jax
import jax.numpy as jnp
from jax.experimental import pallas as pl
from jax.experimental.pallas import tpu as pltpu

VOCAB = 50            # len(ws)
VOCAB_PAD = 128       # pad vocab axis to one full lane-width vreg
MAX_LEN = 8           # max_len
EMB = 100             # embedding dim
NUM_CLASSES = 2
FLAT = MAX_LEN * EMB  # 800
B_TILE_MAX = 256      # batch rows per grid step (keeps live intermediates ~1 MiB)


def _round_up(n, m):
    return (n + m - 1) // m * m


def fused_emb_fc_logsoftmax_kernel(ids_ref, dtab_ref, o_ref):
    """One dispatch: embedding lookup + linear + 2-class log_softmax.

    ids_ref:  (Bt, L)       int32   token ids                         (VMEM)
    dtab_ref: (L, VOCAB_PAD) float32 difference logit table D[l, v]   (VMEM, bias folded in)
    o_ref:    (C, Bt)       float32 log-probs, lane-dense on batch    (VMEM)
    """
    ids = ids_ref[...]                                   # (Bt, L) int32
    bt, L = ids.shape
    V = dtab_ref.shape[1]                                 # 128
    dtab = dtab_ref[...]                                  # (L, V) = one 8x128 vreg

    # One-hot over the padded vocab from an iota compare: pure VPU work,
    # no dynamic indexing, no gather, no MXU. Padded columns (>=50) never match.
    vocab_iota = jax.lax.broadcasted_iota(jnp.int32, (bt, L, V), 2)
    onehot = vocab_iota == ids[:, :, None]                # (Bt, L, V) bool

    picked = jnp.where(onehot, dtab[None, :, :], 0.0)     # (Bt, L, V) VPU select
    per_pos = jnp.sum(picked, axis=2)                     # (Bt, L)    lane reduce (XLU)
    d = jnp.sum(per_pos, axis=1)                          # (Bt,)      d = z1 - z0 (bias incl.)

    # Numerically-stable 2-class log_softmax via softplus:
    #   log p0 = -softplus(d)
    #   log p1 = -softplus(-d) = d - softplus(d)
    sp = jnp.maximum(d, 0.0) + jnp.log(1.0 + jnp.exp(-jnp.abs(d)))   # exp/log -> EUP slot
    o_ref[0, :] = -sp
    o_ref[1, :] = d - sp


def precompute_diff_table(emb_table, fc_w, fc_b):
    """One-time static-parameter fold (runs at init, constant-folds under jit).

    D[l, v] = emb[v, :] @ (W[l*E:(l+1)*E, 1] - W[l*E:(l+1)*E, 0]),
    with the bias difference (b1 - b0) folded into position l == 0, then the vocab
    axis zero-padded to 128 lanes.
    """
    w3 = fc_w.reshape(MAX_LEN, EMB, NUM_CLASSES)                 # (L, E, C)
    table = jnp.einsum("ve,lec->clv", emb_table, w3)             # (C, L, V)
    diff = table[1] - table[0]                                   # (L, V)
    diff = diff.at[0, :].add(fc_b[1] - fc_b[0])                  # fold bias diff into l == 0
    diff = jnp.pad(diff, ((0, 0), (0, VOCAB_PAD - VOCAB)))       # (L, 128), zero padding
    return diff.astype(jnp.float32)


def my_model_forward(input_ids, diff_table):
    """Equivalent of MyModel.forward, as a single fused Pallas kernel call."""
    B = input_ids.shape[0]
    if B >= B_TILE_MAX:
        b_tile = B_TILE_MAX                      # 256 divisible by 128 -> legal lane block
        b_pad = _round_up(B, b_tile)
    else:
        b_tile = b_pad = _round_up(B, 8)         # single full-extent block (legal: == full dim)

    ids = input_ids.astype(jnp.int32)
    if b_pad != B:
        # Padded rows compute garbage log-probs on token id 0 and are sliced off below.
        ids = jnp.pad(ids, ((0, b_pad - B), (0, 0)))

    out = pl.pallas_call(
        fused_emb_fc_logsoftmax_kernel,
        out_shape=jax.ShapeDtypeStruct((NUM_CLASSES, b_pad), jnp.float32),
        grid=(b_pad // b_tile,),
        in_specs=[
            pl.BlockSpec((b_tile, MAX_LEN), lambda i: (i, 0)),           # ids: tiled on batch
            pl.BlockSpec((MAX_LEN, VOCAB_PAD), lambda i: (0, 0)),        # diff table: resident
        ],
        out_specs=pl.BlockSpec((NUM_CLASSES, b_tile), lambda i: (0, i)),  # lane-dense on batch
        compiler_params=pltpu.CompilerParams(
            dimension_semantics=("parallel",),   # batch tiles split across v7x's 2 TCs
        ),
    )(ids, diff_table)

    return out[:, :B].T                          # (B, NUM_CLASSES) log-probs


def init_params(key):
    k_emb, k_w, k_b = jax.random.split(key, 3)
    # nn.Embedding default init: N(0, 1)
    emb_table = jax.random.normal(k_emb, (VOCAB, EMB), dtype=jnp.float32)
    # nn.Linear default init: U(-1/sqrt(fan_in), 1/sqrt(fan_in))
    bound = 1.0 / jnp.sqrt(jnp.float32(FLAT))
    fc_w = jax.random.uniform(k_w, (FLAT, NUM_CLASSES), jnp.float32, -bound, bound)
    fc_b = jax.random.uniform(k_b, (NUM_CLASSES,), jnp.float32, -bound, bound)
    return emb_table, fc_w, fc_b


if __name__ == "__main__":
    key = jax.random.PRNGKey(0)
    k_ids, k_params = jax.random.split(key)

    B = 2
    input_ids = jax.random.randint(k_ids, (B, MAX_LEN), 0, VOCAB, dtype=jnp.int32)
    emb_table, fc_w, fc_b = init_params(k_params)

    diff_table = precompute_diff_table(emb_table, fc_w, fc_b)   # once, at init
    out = my_model_forward(input_ids, diff_table)
    out = jax.block_until_ready(out)

    # Reference in plain JAX (original module math: gather -> flatten -> fc -> log_softmax).
    x_ref = jnp.take(emb_table, input_ids, axis=0).reshape(B, FLAT)
    logits_ref = x_ref @ fc_w + fc_b
    ref = jax.nn.log_softmax(logits_ref, axis=-1)
    assert out.shape == (B, NUM_CLASSES)
    assert jnp.allclose(out, ref, atol=1e-5, rtol=1e-5), (out, ref)

    print("KERNEL_OK")
</pallas_src>

<mosaic_0001>
module attributes {stable_mosaic.version = 11 : i64} {
  func.func @fused_emb_fc_logsoftmax_kernel(%arg0: i32, %arg1: memref<8x8xi32, #tpu.memory_space<vmem>>, %arg2: memref<8x128xf32, #tpu.memory_space<vmem>>, %arg3: memref<2x8xf32, #tpu.memory_space<vmem>>) attributes {dimension_semantics = [#tpu.dimension_semantics<parallel>], iteration_bounds = array<i64: 1>, scalar_prefetch = 0 : i64, scratch_operands = 0 : i64, tpu.core_type = #tpu.core_type<tc>, window_params = [{transform_indices = @transform_0, window_bounds = array<i64: 8, 8>}, {pipeline_mode = #tpu.pipeline_mode<synchronous>, transform_indices = @transform_1, window_bounds = array<i64: 8, 128>}, {transform_indices = @transform_2, window_bounds = array<i64: 2, 8>}]} {
    %c0 = arith.constant 0 : index
    %c0_0 = arith.constant 0 : index
    %0 = vector.load %arg1[%c0, %c0_0] : memref<8x8xi32, #tpu.memory_space<vmem>>, vector<8x8xi32>
    %c0_1 = arith.constant 0 : index
    %c0_2 = arith.constant 0 : index
    %1 = vector.load %arg2[%c0_1, %c0_2] : memref<8x128xf32, #tpu.memory_space<vmem>>, vector<8x128xf32>
    %2 = tpu.iota {dimensions = array<i32: 2>} : vector<8x8x128xi32>
    %3 = vector.shape_cast %0 : vector<8x8xi32> to vector<8x8x1xi32>
    %4 = vector.broadcast %3 : vector<8x8x1xi32> to vector<8x8x128xi32>
    %5 = arith.cmpi eq, %2, %4 : vector<8x8x128xi32>
    %6 = vector.shape_cast %1 : vector<8x128xf32> to vector<1x8x128xf32>
    %cst = arith.constant 0.000000e+00 : f32
    %7 = vector.shape_cast %6 : vector<1x8x128xf32> to vector<1x8x128xf32>
    %8 = vector.broadcast %7 : vector<1x8x128xf32> to vector<8x8x128xf32>
    %9 = vector.broadcast %cst : f32 to vector<8x8x128xf32>
    %10 = arith.select %5, %8, %9 : vector<8x8x128xi1>, vector<8x8x128xf32>
    %cst_3 = arith.constant dense<0.000000e+00> : vector<8x8xf32>
    %11 = vector.multi_reduction <add>, %10, %cst_3 [2] : vector<8x8x128xf32> to vector<8x8xf32>
    %cst_4 = arith.constant dense<0.000000e+00> : vector<8xf32>
    %12 = vector.multi_reduction <add>, %11, %cst_4 [1] : vector<8x8xf32> to vector<8xf32>
    %cst_5 = arith.constant 0.000000e+00 : f32
    %13 = vector.broadcast %cst_5 : f32 to vector<8xf32>
    %14 = arith.maximumf %12, %13 : vector<8xf32>
    %15 = math.absf %12 : vector<8xf32>
    %cst_6 = arith.constant 0.000000e+00 : f32
    %16 = vector.broadcast %cst_6 : f32 to vector<8xf32>
    %17 = arith.subf %16, %15 : vector<8xf32>
    %18 = math.exp %17 : vector<8xf32>
    %cst_7 = arith.constant 1.000000e+00 : f32
    %19 = vector.broadcast %cst_7 : f32 to vector<8xf32>
    %20 = arith.addf %19, %18 : vector<8xf32>
    %21 = math.log %20 : vector<8xf32>
    %22 = arith.addf %14, %21 : vector<8xf32>
    %cst_8 = arith.constant 0.000000e+00 : f32
    %23 = vector.broadcast %cst_8 : f32 to vector<8xf32>
    %24 = arith.subf %23, %22 : vector<8xf32>
    %c0_9 = arith.constant 0 : index
    %c0_10 = arith.constant 0 : index
    %25 = vector.load %arg3[%c0_9, %c0_10] : memref<2x8xf32, #tpu.memory_space<vmem>>, vector<1x8xf32>
    %26 = vector.shape_cast %25 : vector<1x8xf32> to vector<8xf32>
    %27 = vector.shape_cast %24 : vector<8xf32> to vector<1x8xf32>
    tpu.vector_store %arg3[%c0_9, %c0_10], %27 {strides = array<i32>} : memref<2x8xf32, #tpu.memory_space<vmem>>, vector<1x8xf32>,
    %28 = arith.subf %12, %22 : vector<8xf32>
    %c1 = arith.constant 1 : index
    %c0_11 = arith.constant 0 : index
    %29 = vector.load %arg3[%c1, %c0_11] : memref<2x8xf32, #tpu.memory_space<vmem>>, vector<1x8xf32>
    %30 = vector.shape_cast %29 : vector<1x8xf32> to vector<8xf32>
    %31 = vector.shape_cast %28 : vector<8xf32> to vector<1x8xf32>
    tpu.vector_store %arg3[%c1, %c0_11], %31 {strides = array<i32>} : memref<2x8xf32, #tpu.memory_space<vmem>>, vector<1x8xf32>,
    return
  }
  func.func @transform_0(%arg0: i32) -> (i32, i32) {
    %c0_i32 = arith.constant 0 : i32
    %c0_i32_0 = arith.constant 0 : i32
    return %arg0, %c0_i32 : i32, i32
  }
  func.func @transform_1(%arg0: i32) -> (i32, i32) {
    %c0_i32 = arith.constant 0 : i32
    %c0_i32_0 = arith.constant 0 : i32
    %c0_i32_1 = arith.constant 0 : i32
    return %c0_i32, %c0_i32_0 : i32, i32
  }
  func.func @transform_2(%arg0: i32) -> (i32, i32) {
    %c0_i32 = arith.constant 0 : i32
    %c0_i32_0 = arith.constant 0 : i32
    return %c0_i32, %arg0 : i32, i32
  }
}

</mosaic_0001>

<llo_original>
// kernel: tpu_custom_call.1
$region0: #{tpu_custom_call.1}
  #allocation0 [shape = 'u32[]', space=smem, size = 0x4, offset = 0x4, fixed_abs, tag = 'smem constant byte address 0x4 - core index']
  #allocation1 [shape = 'u32[144,128]{1,0:T(1,128)}', space=vmem, size = 0x12000, scoped, tag = 'internal scratch']
  %s0 = inlined_call_operand.hbm [shape: s32[8,8], index: 0, kind: input, shape index: {}]
  %s1 = inlined_call_operand.hbm [shape: f32[8,128], index: 1, kind: input, shape index: {}]
  %s2 = inlined_call_operand.hbm [shape: f32[2,8], index: 2, kind: output, shape index: {}]
  %s3 = sld [smem:[#allocation0]]
  $region26: #{tpu_custom_call.1} parent=0
    _
  %s5 = ssub.s32 1, %s3
  %s6 = scalar_select 0, %s5, %s3
  $region1: #{tpu_custom_call.1} parent=0
    #allocation2 [shape = 'u8[4096]{0}', space=vmem, size = 0x1000, scoped, tag = 'input window, operand 0, single buffered']
    #allocation3 [shape = 's32[1]{0}', space=sflag, size = 0x4, scoped, tag = 'scoped memory for tpu_custom_call.1']
    #allocation4 [shape = 's32[1]{0}', space=sflag, size = 0x4, scoped, tag = 'scoped memory for tpu_custom_call.1']
    #allocation5 [shape = 'u8[4096]{0}', space=vmem, size = 0x1000, scoped, tag = 'input window, operand 1, single buffered']
    #allocation6 [shape = 's32[1]{0}', space=sflag, size = 0x4, scoped, tag = 'scoped memory for tpu_custom_call.1']
    #allocation7 [shape = 'u8[1024]{0}', space=vmem, size = 0x400, scoped, tag = 'output window, operand 0, single buffered']
    %7 = vsyncpa [#allocation3], 0
    %8 = vsyncpa [#allocation6], 0
    %9 = vsyncpa [#allocation4], 0
    // Predicated region
    $region2: #{tpu_custom_call.1} parent=1 // pred_check
      _
    $region3: #{tpu_custom_call.1} parent=1 // pred_check_branch
      %11 = sbr.rel (0) target = $region5
    $region4: #{tpu_custom_call.1} parent=1 // pred_region
      %s13 = ssub.s32 128, 128
      %14 = vsyncadd [#allocation3], %s13
      %s16 = sshll.u32 [#allocation2], 4
      %s17 = int_to_ptr.vmem [resolvable:$true] %s16
      %19 = dma.hbm_to_vmem [thread:$0]  %s0, 128, %s17, [#allocation3]
    $region5: #{tpu_custom_call.1} parent=1 // pred_fallthru
      _
    // Predicated region
    $region6: #{tpu_custom_call.1} parent=1 // pred_check
      _
    $region7: #{tpu_custom_call.1} parent=1 // pred_check_branch
      %21 = sbr.rel (0) target = $region9
    $region8: #{tpu_custom_call.1} parent=1 // pred_region
      %s23 = ssub.s32 128, 128
      %24 = vsyncadd [#allocation6], %s23
      %s26 = sshll.u32 [#allocation5], 4
      %s27 = int_to_ptr.vmem [resolvable:$true] %s26
      %29 = dma.hbm_to_vmem [thread:$0]  %s1, 128, %s27, [#allocation6]
    $region9: #{tpu_custom_call.1} parent=1 // pred_fallthru
      _
    // Predicated region
    $region10: #{tpu_custom_call.1} parent=1 // pred_check
      _
    $region11: #{tpu_custom_call.1} parent=1 // pred_check_branch
      %31 = sbr.rel (0) target = $region13
    $region12: #{tpu_custom_call.1} parent=1 // pred_region
      %32 = dma.done [#allocation3], 128
    $region13: #{tpu_custom_call.1} parent=1 // pred_fallthru
      _
    // Predicated region
    $region14: #{tpu_custom_call.1} parent=1 // pred_check
      _
    $region15: #{tpu_custom_call.1} parent=1 // pred_check_branch
      %34 = sbr.rel (0) target = $region17
    $region16: #{tpu_custom_call.1} parent=1 // pred_region
      %35 = dma.done [#allocation6], 128
    $region17: #{tpu_custom_call.1} parent=1 // pred_fallthru
      _
    %v36 = vld [vmem:[#allocation2] sm:$0xff]
    %v37 = vld [vmem:[#allocation5] sm:$0xff]
    %v38 = vlaneseq
    %v39 = vand.u32 %v38, 127
    %v40 = vlaneseq
    %v41 = vshrl.u32 %v40, 7
    %v42 = vsub.s32 0, %v41
    %v43 = vrot.slane %v36, %v42
    %45 = vbcast.lane.b32.xlu0 %v43, 256
    %v46 = vpop.permute.xlu0 %45
    %v47 = vlaneseq
    %v48 = vshrl.u32 %v47, 7
    %v49 = vsub.s32 1, %v48
    %v50 = vrot.slane %v36, %v49
    %52 = vbcast.lane.b32.xlu0 %v50, 256
    %v53 = vpop.permute.xlu0 %52
    %v54 = vlaneseq
    %v55 = vshrl.u32 %v54, 7
    %v56 = vsub.s32 2, %v55
    %v57 = vrot.slane %v36, %v56
    %59 = vbcast.lane.b32.xlu0 %v57, 256
    %v60 = vpop.permute.xlu0 %59
    %v61 = vlaneseq
    %v62 = vshrl.u32 %v61, 7
    %v63 = vsub.s32 3, %v62
    %v64 = vrot.slane %v36, %v63
    %66 = vbcast.lane.b32.xlu0 %v64, 256
    %v67 = vpop.permute.xlu0 %66
    %v68 = vlaneseq
    %v69 = vshrl.u32 %v68, 7
    %v70 = vsub.s32 4, %v69
    %v71 = vrot.slane %v36, %v70
    %73 = vbcast.lane.b32.xlu0 %v71, 256
    %v74 = vpop.permute.xlu0 %73
    %v75 = vlaneseq
    %v76 = vshrl.u32 %v75, 7
    %v77 = vsub.s32 5, %v76
    %v78 = vrot.slane %v36, %v77
    %80 = vbcast.lane.b32.xlu0 %v78, 256
    %v81 = vpop.permute.xlu0 %80
    %v82 = vlaneseq
    %v83 = vshrl.u32 %v82, 7
    %v84 = vsub.s32 6, %v83
    %v85 = vrot.slane %v36, %v84
    %87 = vbcast.lane.b32.xlu0 %v85, 256
    %v88 = vpop.permute.xlu0 %87
    %v89 = vlaneseq
    %v90 = vshrl.u32 %v89, 7
    %v91 = vsub.s32 7, %v90
    %v92 = vrot.slane %v36, %v91
    %94 = vbcast.lane.b32.xlu0 %v92, 256
    %v95 = vpop.permute.xlu0 %94
    %vm96 = vcmp.eq.s32.totalorder %v39, %v46
    %vm97 = vcmp.eq.s32.totalorder %v39, %v53
    %vm98 = vcmp.eq.s32.totalorder %v39, %v60
    %vm99 = vcmp.eq.s32.totalorder %v39, %v67
    %vm100 = vcmp.eq.s32.totalorder %v39, %v74
    %vm101 = vcmp.eq.s32.totalorder %v39, %v81
    %vm102 = vcmp.eq.s32.totalorder %v39, %v88
    %vm103 = vcmp.eq.s32.totalorder %v39, %v95
    %v104 = vsel %vm96, %v37, 0.0
    %v105 = vsel %vm97, %v37, 0.0
    %v106 = vsel %vm98, %v37, 0.0
    %v107 = vsel %vm99, %v37, 0.0
    %v108 = vsel %vm100, %v37, 0.0
    %v109 = vsel %vm101, %v37, 0.0
    %v110 = vsel %vm102, %v37, 0.0
    %v111 = vsel %vm103, %v37, 0.0
    %112 = vadd.xlane.f32.xlu0 %v104
    %v113 = vpop.xlane.xlu0 %112
    %114 = vadd.xlane.f32.xlu0 %v105
    %v115 = vpop.xlane.xlu0 %114
    %116 = vadd.xlane.f32.xlu0 %v106
    %v117 = vpop.xlane.xlu0 %116
    %118 = vadd.xlane.f32.xlu0 %v107
    %v119 = vpop.xlane.xlu0 %118
    %120 = vadd.xlane.f32.xlu0 %v108
    %v121 = vpop.xlane.xlu0 %120
    %122 = vadd.xlane.f32.xlu0 %v109
    %v123 = vpop.xlane.xlu0 %122
    %124 = vadd.xlane.f32.xlu0 %v110
    %v125 = vpop.xlane.xlu0 %124
    %126 = vadd.xlane.f32.xlu0 %v111
    %v127 = vpop.xlane.xlu0 %126
    %v136 = vlaneseq
    %v137 = vshrl.u32 %v136, 7
    %v138 = vsub.s32 %v39, %v137
    %v139 = vrot.slane %v113, %v138
    %v140 = vlaneseq
    %v141 = vshrl.u32 %v140, 7
    %v142 = vsub.s32 %v39, %v141
    %v143 = vrot.slane %v115, %v142
    %v144 = vlaneseq
    %v145 = vshrl.u32 %v144, 7
    %v146 = vsub.s32 %v39, %v145
    %v147 = vrot.slane %v117, %v146
    %v148 = vlaneseq
    %v149 = vshrl.u32 %v148, 7
    %v150 = vsub.s32 %v39, %v149
    %v151 = vrot.slane %v119, %v150
    %v152 = vlaneseq
    %v153 = vshrl.u32 %v152, 7
    %v154 = vsub.s32 %v39, %v153
    %v155 = vrot.slane %v121, %v154
    %v156 = vlaneseq
    %v157 = vshrl.u32 %v156, 7
    %v158 = vsub.s32 %v39, %v157
    %v159 = vrot.slane %v123, %v158
    %v160 = vlaneseq
    %v161 = vshrl.u32 %v160, 7
    %v162 = vsub.s32 %v39, %v161
    %v163 = vrot.slane %v125, %v162
    %v164 = vlaneseq
    %v165 = vshrl.u32 %v164, 7
    %v166 = vsub.s32 %v39, %v165
    %v167 = vrot.slane %v127, %v166
    %vm168 = vcmask 1041409
    %v169 = vsel %vm168, %v143, %v139
    %vm170 = vcmask 1042434
    %v171 = vsel %vm170, %v147, %v169
    %vm172 = vcmask 1043459
    %v173 = vsel %vm172, %v151, %v171
    %vm174 = vcmask 1044484
    %v175 = vsel %vm174, %v155, %v173
    %vm176 = vcmask 1045509
    %v177 = vsel %vm176, %v159, %v175
    %vm178 = vcmask 1046534
    %v179 = vsel %vm178, %v163, %v177
    %vm180 = vcmask 1047559
    %v181 = vsel %vm180, %v167, %v179
    %vm183 = vcmask 64512
    %v184 = vsel %vm183, %v181, 0.0
    %185 = vadd.xlane.f32.xlu0 %v184
    %v186 = vpop.xlane.xlu0 %185
    %v187 = vmax.f32 %v186, 0.0
    %v188 = vand.u32 2147483647, %v186
    %v189 = vsub.f32 0.0, %v188
    %v190 = vmul.f32 %v189, 1.442695
    %v191 = vpow.pop %v190
    %v192 = vadd.f32 %v191, 1.0
    %v193 = vlog2.pop %v192
    %v194 = vmul.f32 %v193, 0.6931472
    %v195 = vadd.f32 %v187, %v194
    %v196 = vsub.f32 0.0, %v195
    %v198 = vlaneseq
    %v199 = vshrl.u32 %v198, 7
    %v200 = vsub.s32 %v39, %v199
    %v201 = vrot.slane %v196, %v200
    %vm203 = vcmask 57344
    %204 = vst.msk [vmem:[#allocation7] sm:$0x1] %vm203, %v201
    %v205 = vsub.f32 %v186, %v195
    %v207 = vlaneseq
    %v208 = vshrl.u32 %v207, 7
    %v209 = vsub.s32 %v39, %v208
    %v210 = vrot.slane %v205, %v209
    %212 = vst.msk [vmem:[#allocation7 + $0x1] sm:$0x1] %vm203, %v210
    // Predicated region
    $region18: #{tpu_custom_call.1} parent=1 // pred_check
      _
    $region19: #{tpu_custom_call.1} parent=1 // pred_check_branch
      %214 = sbr.rel (0) target = $region21
    $region20: #{tpu_custom_call.1} parent=1 // pred_region
      %s216 = ssub.s32 32, 32
      %217 = vsyncadd [#allocation4], %s216
      %s219 = sshll.u32 [#allocation7], 4
      %s220 = int_to_ptr.vmem [resolvable:$true] %s219
      %222 = dma.vmem_to_hbm [thread:$0]  %s220, 32, %s2, [#allocation4]
    $region21: #{tpu_custom_call.1} parent=1 // pred_fallthru
      _
    // Predicated region
    $region22: #{tpu_custom_call.1} parent=1 // pred_check
      _
    $region23: #{tpu_custom_call.1} parent=1 // pred_check_branch
      %224 = sbr.rel (0) target = $region25
    $region24: #{tpu_custom_call.1} parent=1 // pred_region
      %225 = dma.done [#allocation4], 32
    $region25: #{tpu_custom_call.1} parent=1 // pred_fallthru
      _
    %226 = vsyncpa [#allocation3], 1
    %227 = vsyncpa [#allocation6], 1
    %228 = vsyncpa [#allocation4], 1

</llo_original>
